<compile_context>
chip_gen: v7x
topology: tpu7x:2x2x1
jax: 0.10.0
libtpu: 0.0.40
codegen_flags: <defaults>
</compile_context>

<pallas_src>
import functools

import jax
import jax.numpy as jnp
from jax.experimental import pallas as pl
from jax.experimental.pallas import tpu as pltpu


def _round_up(x, m):
    return (x + m - 1) // m * m


def _bce_pairs_kernel(lab_col_ref, lab_row_ref, pred_ref, out_ref, acc_ref,
                      *, B, TM, TN, acc_rows, mask_rows, mask_cols):
    j = pl.program_id(1)

    # New row tile -> reset the accumulator.
    @pl.when(j == 0)
    def _():
        acc_ref[...] = jnp.zeros_like(acc_ref)

    # Pairwise same-class indicator for this (row-tile, col-tile): integer
    # broadcast compare of a (TM,1) label column against a (1,TN) label row.
    y = lab_col_ref[...] == lab_row_ref[...]                 # (TM, TN) bool

    # Single log per element (PyTorch BCELoss clamps each log term at -100).
    p = pred_ref[...].astype(jnp.float32)
    q = jnp.where(y, p, 1.0 - p)
    loss = -jnp.maximum(jnp.log(q), -100.0)                  # (TM, TN) f32

    # Mask padded rows/cols on edge tiles (only generated when B is unaligned).
    if mask_rows or mask_cols:
        i = pl.program_id(0)
        valid = None
        if mask_rows:
            r = i * TM + jax.lax.broadcasted_iota(jnp.int32, (TM, TN), 0)
            valid = r < B
        if mask_cols:
            c = j * TN + jax.lax.broadcasted_iota(jnp.int32, (TM, TN), 1)
            cv = c < B
            valid = cv if valid is None else jnp.logical_and(valid, cv)
        loss = jnp.where(valid, loss, 0.0)

    # Fold TM -> acc_rows sublanes: layout-preserving reshape + pure VPU vreg
    # adds; keeps XLU (cross-lane) work out of the hot loop.
    if acc_rows == TM:
        acc_ref[...] += loss
    else:
        acc_ref[...] += loss.reshape(TM // acc_rows, acc_rows, TN).sum(axis=0)

    # Epilogue for this row tile: one cross-lane reduce, one lane-dense store.
    @pl.when(j == pl.num_programs(1) - 1)
    def _():
        out_ref[...] = jnp.full(out_ref.shape, jnp.sum(acc_ref[...]),
                                jnp.float32)


def normal_bce_loss(labels, output_pred, *, tm=1024, tn=2048):
    """labels: (B,) class ids; output_pred: (B, B) probabilities in [0, 1]."""
    B = labels.shape[0]
    assert output_pred.shape == (B, B)
    assert tm % 8 == 0 and tn % 128 == 0

    # Integer compare when possible (exact for any id; float compare only as a
    # fallback for float-typed labels).
    if jnp.issubdtype(labels.dtype, jnp.integer):
        lab = labels.astype(jnp.int32)
    else:
        lab = labels.astype(jnp.float32)

    # Tile sizes: full extent when it fits in one tile (block == full dim is
    # always legal); otherwise (8,128)-aligned tiles with padded inputs.
    if B <= tm:
        TM, BR = B, B
    else:
        TM, BR = tm, _round_up(B, tm)
    if B <= tn:
        TN, BC = B, B
    else:
        TN, BC = tn, _round_up(B, tn)
    n_rows, n_cols = BR // TM, BC // TN
    mask_rows, mask_cols = BR != B, BC != B

    # Keep predictions in their native dtype (e.g. bf16) into the kernel; the
    # f32 upcast happens on the loaded tile in VMEM.
    pred = output_pred
    if mask_rows or mask_cols:
        # TODO(synk): padding materializes an HBM copy; only hit when B is not
        # a multiple of the tile size.
        pred = jnp.pad(pred, ((0, BR - B), (0, BC - B)))
    lab_col = jnp.pad(lab, (0, BR - B)).reshape(BR, 1)
    lab_row = jnp.pad(lab, (0, BC - B)).reshape(1, BC)

    acc_rows = 8 if (TM % 8 == 0 and TM > 8) else TM

    kernel = functools.partial(
        _bce_pairs_kernel, B=B, TM=TM, TN=TN, acc_rows=acc_rows,
        mask_rows=mask_rows, mask_cols=mask_cols)

    partials = pl.pallas_call(
        kernel,
        out_shape=jax.ShapeDtypeStruct((n_rows, 1, 128), jnp.float32),
        grid_spec=pltpu.PrefetchScalarGridSpec(
            num_scalar_prefetch=0,
            grid=(n_rows, n_cols),
            in_specs=[
                pl.BlockSpec((TM, 1), lambda i, j: (i, 0)),   # row labels (col vec)
                pl.BlockSpec((1, TN), lambda i, j: (0, j)),   # col labels (row vec)
                pl.BlockSpec((TM, TN), lambda i, j: (i, j)),  # prediction tile
            ],
            out_specs=pl.BlockSpec((1, 1, 128), lambda i, j: (i, 0, 0)),
            scratch_shapes=[pltpu.VMEM((acc_rows, TN), jnp.float32)],
        ),
        compiler_params=pltpu.CompilerParams(
            dimension_semantics=("parallel", "arbitrary"),
            vmem_limit_bytes=48 * 1024 * 1024,
        ),
    )(lab_col, lab_row, pred)

    # Tiny final reduction + mean divisor applied exactly once.
    return jnp.sum(partials[:, 0, 0]) / jnp.float32(B * B)


def _reference(labels, output_pred):
    y = (labels[:, None] == labels[None, :]).astype(jnp.float32)
    p = output_pred.astype(jnp.float32)
    log_p = jnp.maximum(jnp.log(p), -100.0)
    log_1mp = jnp.maximum(jnp.log(1.0 - p), -100.0)
    return jnp.mean(-(y * log_p + (1.0 - y) * log_1mp))


if __name__ == "__main__":
    key = jax.random.PRNGKey(0)
    k1, k2, k3, k4 = jax.random.split(key, 4)

    # Small single-tile case (block == full array dims).
    B = 8
    labels = jax.random.randint(k1, (B,), 0, 3)
    output_pred = jax.nn.sigmoid(jax.random.normal(k2, (B, B), jnp.float32))
    loss = jax.block_until_ready(normal_bce_loss(labels, output_pred))
    ref = jax.block_until_ready(_reference(labels, output_pred))
    assert jnp.allclose(loss, ref, rtol=1e-4, atol=1e-4), (loss, ref)

    # Multi-tile case exercising the grid, accumulator reset/epilogue and
    # edge-tile masking (B=160 with 64x128 tiles -> 3x2 grid, padded edges).
    B2 = 160
    labels2 = jax.random.randint(k3, (B2,), 0, 5)
    pred2 = jax.nn.sigmoid(jax.random.normal(k4, (B2, B2), jnp.float32))
    loss2 = jax.block_until_ready(normal_bce_loss(labels2, pred2, tm=64, tn=128))
    ref2 = jax.block_until_ready(_reference(labels2, pred2))
    assert jnp.allclose(loss2, ref2, rtol=1e-4, atol=1e-4), (loss2, ref2)

    print("KERNEL_OK")
</pallas_src>

<mosaic_0001>
module attributes {stable_mosaic.version = 11 : i64} {
  func.func @_bce_pairs_kernel(%arg0: i32, %arg1: i32, %arg2: memref<8x1xi32, #tpu.memory_space<vmem>>, %arg3: memref<1x8xi32, #tpu.memory_space<vmem>>, %arg4: memref<8x8xf32, #tpu.memory_space<vmem>>, %arg5: memref<1x1x128xf32, #tpu.memory_space<vmem>>, %arg6: memref<8x8xf32, #tpu.memory_space<vmem>>) attributes {dimension_semantics = [#tpu.dimension_semantics<parallel>, #tpu.dimension_semantics<arbitrary>], iteration_bounds = array<i64: 1, 1>, scalar_prefetch = 0 : i64, scratch_operands = 1 : i64, tpu.core_type = #tpu.core_type<tc>, window_params = [{transform_indices = @transform_0, window_bounds = array<i64: 8, 1>}, {transform_indices = @transform_1, window_bounds = array<i64: 1, 8>}, {transform_indices = @transform_2, window_bounds = array<i64: 8, 8>}, {transform_indices = @transform_3, window_bounds = array<i64: 1, 1, 128>}]} {
    %c0_i32 = arith.constant 0 : i32
    %0 = arith.cmpi eq, %arg1, %c0_i32 : i32
    %1 = arith.extui %0 : i1 to i32
    %c0_i32_0 = arith.constant 0 : i32
    %2 = arith.cmpi ne, %1, %c0_i32_0 : i32
    scf.if %2 {
      %cst_14 = arith.constant 0.000000e+00 : f32
      %23 = vector.broadcast %cst_14 : f32 to vector<8x8xf32>
      %c0_15 = arith.constant 0 : index
      %c0_16 = arith.constant 0 : index
      %24 = vector.load %arg6[%c0_15, %c0_16] : memref<8x8xf32, #tpu.memory_space<vmem>>, vector<8x8xf32>
      tpu.vector_store %arg6[%c0_15, %c0_16], %23 {strides = array<i32>} : memref<8x8xf32, #tpu.memory_space<vmem>>, vector<8x8xf32>,
    } else {
    }
    %c0 = arith.constant 0 : index
    %c0_1 = arith.constant 0 : index
    %3 = vector.load %arg2[%c0, %c0_1] : memref<8x1xi32, #tpu.memory_space<vmem>>, vector<8x1xi32>
    %c0_2 = arith.constant 0 : index
    %c0_3 = arith.constant 0 : index
    %4 = vector.load %arg3[%c0_2, %c0_3] : memref<1x8xi32, #tpu.memory_space<vmem>>, vector<1x8xi32>
    %5 = vector.broadcast %3 : vector<8x1xi32> to vector<8x8xi32>
    %6 = vector.broadcast %4 : vector<1x8xi32> to vector<8x8xi32>
    %7 = arith.cmpi eq, %5, %6 : vector<8x8xi32>
    %c0_4 = arith.constant 0 : index
    %c0_5 = arith.constant 0 : index
    %8 = vector.load %arg4[%c0_4, %c0_5] : memref<8x8xf32, #tpu.memory_space<vmem>>, vector<8x8xf32>
    %cst = arith.constant 1.000000e+00 : f32
    %9 = vector.broadcast %cst : f32 to vector<8x8xf32>
    %10 = arith.subf %9, %8 : vector<8x8xf32>
    %11 = arith.select %7, %8, %10 : vector<8x8xi1>, vector<8x8xf32>
    %12 = math.log %11 : vector<8x8xf32>
    %cst_6 = arith.constant -1.000000e+02 : f32
    %13 = vector.broadcast %cst_6 : f32 to vector<8x8xf32>
    %14 = arith.maximumf %12, %13 : vector<8x8xf32>
    %cst_7 = arith.constant 0.000000e+00 : f32
    %15 = vector.broadcast %cst_7 : f32 to vector<8x8xf32>
    %16 = arith.subf %15, %14 : vector<8x8xf32>
    %c0_8 = arith.constant 0 : index
    %c0_9 = arith.constant 0 : index
    %17 = vector.load %arg6[%c0_8, %c0_9] : memref<8x8xf32, #tpu.memory_space<vmem>>, vector<8x8xf32>
    %18 = arith.addf %17, %16 : vector<8x8xf32>
    %c0_10 = arith.constant 0 : index
    %c0_11 = arith.constant 0 : index
    %19 = vector.load %arg6[%c0_10, %c0_11] : memref<8x8xf32, #tpu.memory_space<vmem>>, vector<8x8xf32>
    tpu.vector_store %arg6[%c0_10, %c0_11], %18 {strides = array<i32>} : memref<8x8xf32, #tpu.memory_space<vmem>>, vector<8x8xf32>,
    %c0_i32_12 = arith.constant 0 : i32
    %20 = arith.cmpi eq, %arg1, %c0_i32_12 : i32
    %21 = arith.extui %20 : i1 to i32
    %c0_i32_13 = arith.constant 0 : i32
    %22 = arith.cmpi ne, %21, %c0_i32_13 : i32
    scf.if %22 {
      %c0_14 = arith.constant 0 : index
      %c0_15 = arith.constant 0 : index
      %23 = vector.load %arg6[%c0_14, %c0_15] : memref<8x8xf32, #tpu.memory_space<vmem>>, vector<8x8xf32>
      %24 = vector.shape_cast %23 : vector<8x8xf32> to vector<1x8x8xf32>
      %cst_16 = arith.constant dense<0.000000e+00> : vector<1xf32>
      %25 = vector.multi_reduction <add>, %24, %cst_16 [1, 2] : vector<1x8x8xf32> to vector<1xf32>
      %26 = vector.shape_cast %25 : vector<1xf32> to vector<1x1x1xf32>
      %27 = vector.extract %26[0, 0, 0] : f32 from vector<1x1x1xf32>
      %28 = vector.broadcast %27 : f32 to vector<1x1x128xf32>
      %c0_17 = arith.constant 0 : index
      %c0_18 = arith.constant 0 : index
      %c0_19 = arith.constant 0 : index
      %29 = vector.load %arg5[%c0_17, %c0_18, %c0_19] : memref<1x1x128xf32, #tpu.memory_space<vmem>>, vector<1x1x128xf32>
      tpu.vector_store %arg5[%c0_17, %c0_18, %c0_19], %28 {strides = array<i32>} : memref<1x1x128xf32, #tpu.memory_space<vmem>>, vector<1x1x128xf32>,
    } else {
    }
    return
  }
  func.func @transform_0(%arg0: i32, %arg1: i32) -> (i32, i32) {
    %c0_i32 = arith.constant 0 : i32
    %c0_i32_0 = arith.constant 0 : i32
    return %arg0, %c0_i32 : i32, i32
  }
  func.func @transform_1(%arg0: i32, %arg1: i32) -> (i32, i32) {
    %c0_i32 = arith.constant 0 : i32
    %c0_i32_0 = arith.constant 0 : i32
    return %c0_i32, %arg1 : i32, i32
  }
  func.func @transform_2(%arg0: i32, %arg1: i32) -> (i32, i32) {
    %c0_i32 = arith.constant 0 : i32
    return %arg0, %arg1 : i32, i32
  }
  func.func @transform_3(%arg0: i32, %arg1: i32) -> (i32, i32, i32) {
    %c0_i32 = arith.constant 0 : i32
    %c0_i32_0 = arith.constant 0 : i32
    %c0_i32_1 = arith.constant 0 : i32
    return %arg0, %c0_i32, %c0_i32_0 : i32, i32, i32
  }
}

</mosaic_0001>

<llo_original>
// kernel: tpu_custom_call.1
$region0: #{tpu_custom_call.1}
  #allocation0 [shape = 'u32[]', space=smem, size = 0x4, offset = 0x4, fixed_abs, tag = 'smem constant byte address 0x4 - core index']
  #allocation1 [shape = 'u32[144,128]{1,0:T(1,128)}', space=vmem, size = 0x12000, scoped, tag = 'internal scratch']
  #allocation2 [shape = 'f32[8,8]{1,0:T(8,128)}', space=vmem, size = 0x1000, scoped, tag = 'scratch operand']
  %s0 = inlined_call_operand.vmem [shape: s32[8,1], index: 0, kind: input, shape index: {}]
  %s1 = inlined_call_operand.vmem [shape: s32[1,8], index: 1, kind: input, shape index: {}]
  %s2 = inlined_call_operand.vmem [shape: f32[8,8], index: 2, kind: input, shape index: {}]
  %s3 = inlined_call_operand.hbm [shape: f32[1,1,128], index: 3, kind: output, shape index: {}]
  %s4 = sld [smem:[#allocation0]]
  $region30: #{tpu_custom_call.1} parent=0
    _
  %s6 = ssub.s32 1, %s4
  %s7 = scalar_select 0, %s6, %s4
  $region1: #{tpu_custom_call.1} parent=0
    #allocation3 [shape = 'u8[512]{0}', space=vmem, size = 0x400, scoped, tag = 'output window, operand 0, single buffered']
    #allocation4 [shape = 's32[1]{0}', space=sflag, size = 0x4, scoped, tag = 'scoped memory for tpu_custom_call.1']
    %8 = vsyncpa [#allocation4], 0
    // Predicated region
    $region2: #{tpu_custom_call.1} parent=1 // pred_check
      _
    $region3: #{tpu_custom_call.1} parent=1 // pred_check_branch
      %10 = sbr.rel (0) target = $region5
    $region4: #{tpu_custom_call.1} parent=1 // pred_region
      _
    $region5: #{tpu_custom_call.1} parent=1 // pred_fallthru
      _
    // Predicated region
    $region6: #{tpu_custom_call.1} parent=1 // pred_check
      _
    $region7: #{tpu_custom_call.1} parent=1 // pred_check_branch
      %12 = sbr.rel (0) target = $region9
    $region8: #{tpu_custom_call.1} parent=1 // pred_region
      _
    $region9: #{tpu_custom_call.1} parent=1 // pred_fallthru
      _
    // Predicated region
    $region10: #{tpu_custom_call.1} parent=1 // pred_check
      _
    $region11: #{tpu_custom_call.1} parent=1 // pred_check_branch
      %14 = sbr.rel (0) target = $region13
    $region12: #{tpu_custom_call.1} parent=1 // pred_region
      _
    $region13: #{tpu_custom_call.1} parent=1 // pred_fallthru
      _
    %p15 = scmp.eq.s32.totalorder 0, 0
    // Predicated region
    $region14: #{tpu_custom_call.1} parent=1 // pred_check
      %p16 = pneg %p15
    $region15: #{tpu_custom_call.1} parent=1 // pred_check_branch
      %18 = sbr.rel (%p16) target = $region17
    $region16: #{tpu_custom_call.1} parent=1 // pred_region
      %vm19 = vcmask 64512
      %20 = vst.msk [vmem:[#allocation2] sm:$0xff] %vm19, 0.0
    $region17: #{tpu_custom_call.1} parent=1 // pred_fallthru
      _
    %v21 = vld [vmem:[%s0] sm:$0xff]
    %v22 = vld [vmem:[%s1] sm:$0x1]
    %23 = vset.pattern.permute.xlu0 0
    %24 = vperm.xlu0 %23, %v21
    %v25 = vpop.permute.xlu0 %24
    %v26 = vlaneseq
    %v27 = vshrl.u32 %v26, 7
    %v28 = vsub.s32 0, %v27
    %v29 = vrot.slane %v22, %v28
    %vm30 = vcmp.eq.s32.totalorder %v25, %v29
    %v31 = vld [vmem:[%s2] sm:$0xff]
    %v32 = vsub.f32 1.0, %v31
    %v33 = vsel %vm30, %v31, %v32
    %v34 = vlog2.pop %v33
    %v35 = vmul.f32 %v34, 0.6931472
    %v36 = vmax.f32 %v35, -100.0
    %v37 = vsub.f32 0.0, %v36
    %v38 = vld [vmem:[#allocation2] sm:$0xff]
    %v39 = vadd.f32 %v38, %v37
    %vm40 = vcmask 64512
    %41 = vst.msk [vmem:[#allocation2] sm:$0xff] %vm40, %v39
    // Predicated region
    $region18: #{tpu_custom_call.1} parent=1 // pred_check
      %p42 = pneg %p15
    $region19: #{tpu_custom_call.1} parent=1 // pred_check_branch
      %44 = sbr.rel (%p42) target = $region21
    $region20: #{tpu_custom_call.1} parent=1 // pred_region
      %v45 = vld [vmem:[#allocation2] sm:$0xff]
      %v46 = vsel %vm40, %v45, 0.0
      %47 = vadd.xlane.f32.xlu0 %v46
      %v48 = vpop.xlane.xlu0 %47
      %v49 = vrot.slane %v48, 4
      %v50 = vadd.f32 %v48, %v49
      %v51 = vrot.slane %v50, 2
      %v52 = vadd.f32 %v50, %v51
      %v53 = vrot.slane %v52, 1
      %v54 = vadd.f32 %v52, %v53
      %s55 = vtos %v54
      %v56 = vstv %s55
      %57 = vst [vmem:[#allocation3] sm:$0x1] %v56
    $region21: #{tpu_custom_call.1} parent=1 // pred_fallthru
      _
    // Predicated region
    $region22: #{tpu_custom_call.1} parent=1 // pred_check
      _
    $region23: #{tpu_custom_call.1} parent=1 // pred_check_branch
      %59 = sbr.rel (0) target = $region25
    $region24: #{tpu_custom_call.1} parent=1 // pred_region
      %s61 = ssub.s32 16, 16
      %62 = vsyncadd [#allocation4], %s61
      %s64 = sshll.u32 [#allocation3], 4
      %s65 = int_to_ptr.vmem [resolvable:$true] %s64
      %67 = dma.vmem_to_hbm [thread:$0]  %s65, 16, %s3, [#allocation4]
    $region25: #{tpu_custom_call.1} parent=1 // pred_fallthru
      _
    // Predicated region
    $region26: #{tpu_custom_call.1} parent=1 // pred_check
      _
    $region27: #{tpu_custom_call.1} parent=1 // pred_check_branch
      %69 = sbr.rel (0) target = $region29
    $region28: #{tpu_custom_call.1} parent=1 // pred_region
      %70 = dma.done [#allocation4], 16
    $region29: #{tpu_custom_call.1} parent=1 // pred_fallthru
      _
    %71 = vsyncpa [#allocation4], 1

</llo_original>
